<compile_context>
chip_gen: v5e
topology: v5e:2x2
jax: 0.10.0
libtpu: 0.0.40
codegen_flags: <defaults>
</compile_context>

<pallas_src>
import functools

import jax
import jax.numpy as jnp
from jax.experimental import pallas as pl
from jax.experimental.pallas import tpu as pltpu

_SUB = 8                               # sublane count / accumulator rows
_LANE = 128                            # lane width
_TARGET_BLOCK_BYTES = 2 * 1024 * 1024  # ~2 MiB per input block


def _sc_kernel(x_ref, y_ref, od_ref, oy_ref, *, total_rows, r_block, k_steps):
    """Accumulate sum((y-x)^2) and sum(y^2) into (8, F) output slabs."""
    gi = pl.program_id(0)
    ki = pl.program_id(1)

    @pl.when(ki == 0)
    def _():
        od_ref[...] = jnp.zeros_like(od_ref)
        oy_ref[...] = jnp.zeros_like(oy_ref)

    x = x_ref[...].astype(jnp.float32)
    y = y_ref[...].astype(jnp.float32)
    d = y - x
    d2 = d * d
    y2 = y * y

    if total_rows % r_block:
        # Partial edge block: rows past the array extent hold stale VMEM data.
        # Zero their contribution with a select (safe even if the stale bits
        # squared to NaN/inf — select does not propagate the unpicked operand).
        row0 = (gi * k_steps + ki) * r_block
        rid = jax.lax.broadcasted_iota(jnp.int32, (r_block, 1), 0) + row0
        valid = rid < total_rows
        d2 = jnp.where(valid, d2, 0.0)
        y2 = jnp.where(valid, y2, 0.0)

    cols = d2.shape[1]
    if r_block % _SUB == 0:
        # (R, F) -> (R/8, 8, F) and sum whole sublane-blocks: vreg-to-vreg VPU
        # adds only, no per-step cross-lane reduction.
        od_ref[...] += d2.reshape(r_block // _SUB, _SUB, cols).sum(axis=0)
        oy_ref[...] += y2.reshape(r_block // _SUB, _SUB, cols).sum(axis=0)
    else:
        # Tiny single-block fallback (< 8 rows total): accumulate into row 0;
        # remaining accumulator rows stay at their zero init.
        od_ref[0:1, :] += d2.sum(axis=0, keepdims=True)
        oy_ref[0:1, :] += y2.sum(axis=0, keepdims=True)


def spectral_convergence_loss(x_mag: jax.Array, y_mag: jax.Array) -> jax.Array:
    """JAX/Pallas equivalent of SpectralConvergenceLoss.forward.

    Args:
        x_mag: (B, #frames, #freq_bins) magnitude spectrogram of predicted signal.
        y_mag: (B, #frames, #freq_bins) magnitude spectrogram of groundtruth signal.
    Returns:
        Scalar float32 loss: ||y - x||_F / ||y||_F.
    """
    assert x_mag.shape == y_mag.shape

    f = int(x_mag.shape[-1])
    x2 = x_mag.reshape(-1, f)          # free contiguous collapse, no HBM copy
    y2 = y_mag.reshape(-1, f)
    rows = int(x2.shape[0])

    # --- choose a VMEM-budgeted row tiling ---------------------------------
    lane_f = pl.cdiv(f, _LANE) * _LANE
    r_budget = max(_SUB, (_TARGET_BLOCK_BYTES // (lane_f * 4)) // _SUB * _SUB)

    if r_budget >= rows:
        r_block = rows                 # single full block (always legal)
        nblocks = 1
    else:
        r_block = r_budget             # multiple of 8
        nblocks = pl.cdiv(rows, r_block)
        if nblocks % 2:
            # Nudge block size so the block count is even: enables the 2-chunk
            # megacore split without ever creating a fully out-of-bounds block.
            rb_alt = max(_SUB, pl.cdiv(pl.cdiv(rows, nblocks + 1), _SUB) * _SUB)
            if rb_alt < rows and pl.cdiv(rows, rb_alt) % 2 == 0:
                r_block = rb_alt
                nblocks = pl.cdiv(rows, r_block)

    g = 2 if (nblocks % 2 == 0) else 1     # outer parallel chunks (2 TCs, v7x)
    k = nblocks // g                       # inner reduction steps per chunk

    kern = functools.partial(
        _sc_kernel, total_rows=rows, r_block=r_block, k_steps=k)

    in_map = lambda gi, ki: (gi * k + ki, 0)
    out_map = lambda gi, ki: (gi, 0)

    out_d2, out_y2 = pl.pallas_call(
        kern,
        out_shape=(
            jax.ShapeDtypeStruct((g * _SUB, f), jnp.float32),
            jax.ShapeDtypeStruct((g * _SUB, f), jnp.float32),
        ),
        grid_spec=pl.GridSpec(
            grid=(g, k),
            in_specs=[
                pl.BlockSpec((r_block, f), in_map),
                pl.BlockSpec((r_block, f), in_map),
            ],
            out_specs=[
                pl.BlockSpec((_SUB, f), out_map),
                pl.BlockSpec((_SUB, f), out_map),
            ],
        ),
        compiler_params=pltpu.CompilerParams(
            dimension_semantics=("parallel", "arbitrary"),
        ),
    )(x2, y2)

    # One cross-lane reduction + sqrt/div on tiny partials, in plain JAX.
    return jnp.sqrt(jnp.sum(out_d2)) / jnp.sqrt(jnp.sum(out_y2))


if __name__ == "__main__":
    key = jax.random.PRNGKey(0)
    kx, ky = jax.random.split(key)
    B, T, F = 2, 16, 32  # batch, #frames, #freq_bins

    # Magnitude spectrograms are non-negative.
    x_mag = jax.random.uniform(kx, (B, T, F), dtype=jnp.float32,
                               minval=0.1, maxval=2.0)
    y_mag = jax.random.uniform(ky, (B, T, F), dtype=jnp.float32,
                               minval=0.1, maxval=2.0)

    loss = spectral_convergence_loss(x_mag, y_mag)
    jax.block_until_ready(loss)

    # Reference: torch.norm(y - x, 'fro') / torch.norm(y, 'fro')
    ref = jnp.sqrt(jnp.sum((y_mag - x_mag) ** 2)) / jnp.sqrt(jnp.sum(y_mag ** 2))
    assert jnp.allclose(loss, ref, rtol=1e-5, atol=1e-6), (loss, ref)

    print("KERNEL_OK")
</pallas_src>

<mosaic_0001>
module attributes {stable_mosaic.version = 11 : i64} {
  func.func @_sc_kernel(%arg0: i32, %arg1: i32, %arg2: memref<32x32xf32, #tpu.memory_space<vmem>>, %arg3: memref<32x32xf32, #tpu.memory_space<vmem>>, %arg4: memref<8x32xf32, #tpu.memory_space<vmem>>, %arg5: memref<8x32xf32, #tpu.memory_space<vmem>>) attributes {dimension_semantics = [#tpu.dimension_semantics<parallel>, #tpu.dimension_semantics<arbitrary>], iteration_bounds = array<i64: 1, 1>, scalar_prefetch = 0 : i64, scratch_operands = 0 : i64, tpu.core_type = #tpu.core_type<tc>, window_params = [{transform_indices = @transform_0, window_bounds = array<i64: 32, 32>}, {transform_indices = @transform_1, window_bounds = array<i64: 32, 32>}, {transform_indices = @transform_2, window_bounds = array<i64: 8, 32>}, {transform_indices = @transform_3, window_bounds = array<i64: 8, 32>}]} {
    %c0_i32 = arith.constant 0 : i32
    %0 = arith.cmpi eq, %arg1, %c0_i32 : i32
    %1 = arith.extui %0 : i1 to i32
    %c0_i32_0 = arith.constant 0 : i32
    %2 = arith.cmpi ne, %1, %c0_i32_0 : i32
    scf.if %2 {
      %cst_13 = arith.constant 0.000000e+00 : f32
      %18 = vector.broadcast %cst_13 : f32 to vector<8x32xf32>
      %c0_14 = arith.constant 0 : index
      %c0_15 = arith.constant 0 : index
      %19 = vector.load %arg4[%c0_14, %c0_15] : memref<8x32xf32, #tpu.memory_space<vmem>>, vector<8x32xf32>
      tpu.vector_store %arg4[%c0_14, %c0_15], %18 {strides = array<i32>} : memref<8x32xf32, #tpu.memory_space<vmem>>, vector<8x32xf32>,
      %cst_16 = arith.constant 0.000000e+00 : f32
      %20 = vector.broadcast %cst_16 : f32 to vector<8x32xf32>
      %c0_17 = arith.constant 0 : index
      %c0_18 = arith.constant 0 : index
      %21 = vector.load %arg5[%c0_17, %c0_18] : memref<8x32xf32, #tpu.memory_space<vmem>>, vector<8x32xf32>
      tpu.vector_store %arg5[%c0_17, %c0_18], %20 {strides = array<i32>} : memref<8x32xf32, #tpu.memory_space<vmem>>, vector<8x32xf32>,
    } else {
    }
    %c0 = arith.constant 0 : index
    %c0_1 = arith.constant 0 : index
    %3 = vector.load %arg2[%c0, %c0_1] : memref<32x32xf32, #tpu.memory_space<vmem>>, vector<32x32xf32>
    %c0_2 = arith.constant 0 : index
    %c0_3 = arith.constant 0 : index
    %4 = vector.load %arg3[%c0_2, %c0_3] : memref<32x32xf32, #tpu.memory_space<vmem>>, vector<32x32xf32>
    %5 = arith.subf %4, %3 : vector<32x32xf32>
    %6 = arith.mulf %5, %5 : vector<32x32xf32>
    %7 = arith.mulf %4, %4 : vector<32x32xf32>
    %c0_4 = arith.constant 0 : index
    %c0_5 = arith.constant 0 : index
    %8 = vector.load %arg4[%c0_4, %c0_5] : memref<8x32xf32, #tpu.memory_space<vmem>>, vector<8x32xf32>
    %9 = vector.shape_cast %6 : vector<32x32xf32> to vector<4x8x32xf32>
    %cst = arith.constant dense<0.000000e+00> : vector<8x32xf32>
    %10 = vector.multi_reduction <add>, %9, %cst [0] : vector<4x8x32xf32> to vector<8x32xf32>
    %11 = arith.addf %8, %10 : vector<8x32xf32>
    %c0_6 = arith.constant 0 : index
    %c0_7 = arith.constant 0 : index
    %12 = vector.load %arg4[%c0_6, %c0_7] : memref<8x32xf32, #tpu.memory_space<vmem>>, vector<8x32xf32>
    tpu.vector_store %arg4[%c0_6, %c0_7], %11 {strides = array<i32>} : memref<8x32xf32, #tpu.memory_space<vmem>>, vector<8x32xf32>,
    %c0_8 = arith.constant 0 : index
    %c0_9 = arith.constant 0 : index
    %13 = vector.load %arg5[%c0_8, %c0_9] : memref<8x32xf32, #tpu.memory_space<vmem>>, vector<8x32xf32>
    %14 = vector.shape_cast %7 : vector<32x32xf32> to vector<4x8x32xf32>
    %cst_10 = arith.constant dense<0.000000e+00> : vector<8x32xf32>
    %15 = vector.multi_reduction <add>, %14, %cst_10 [0] : vector<4x8x32xf32> to vector<8x32xf32>
    %16 = arith.addf %13, %15 : vector<8x32xf32>
    %c0_11 = arith.constant 0 : index
    %c0_12 = arith.constant 0 : index
    %17 = vector.load %arg5[%c0_11, %c0_12] : memref<8x32xf32, #tpu.memory_space<vmem>>, vector<8x32xf32>
    tpu.vector_store %arg5[%c0_11, %c0_12], %16 {strides = array<i32>} : memref<8x32xf32, #tpu.memory_space<vmem>>, vector<8x32xf32>,
    return
  }
  func.func @transform_0(%arg0: i32, %arg1: i32) -> (i32, i32) {
    %c1_i32 = arith.constant 1 : i32
    %0 = arith.muli %arg0, %c1_i32 : i32
    %1 = arith.addi %0, %arg1 : i32
    %c0_i32 = arith.constant 0 : i32
    %c0_i32_0 = arith.constant 0 : i32
    return %1, %c0_i32 : i32, i32
  }
  func.func @transform_1(%arg0: i32, %arg1: i32) -> (i32, i32) {
    %c1_i32 = arith.constant 1 : i32
    %0 = arith.muli %arg0, %c1_i32 : i32
    %1 = arith.addi %0, %arg1 : i32
    %c0_i32 = arith.constant 0 : i32
    %c0_i32_0 = arith.constant 0 : i32
    return %1, %c0_i32 : i32, i32
  }
  func.func @transform_2(%arg0: i32, %arg1: i32) -> (i32, i32) {
    %c0_i32 = arith.constant 0 : i32
    %c0_i32_0 = arith.constant 0 : i32
    return %arg0, %c0_i32 : i32, i32
  }
  func.func @transform_3(%arg0: i32, %arg1: i32) -> (i32, i32) {
    %c0_i32 = arith.constant 0 : i32
    %c0_i32_0 = arith.constant 0 : i32
    return %arg0, %c0_i32 : i32, i32
  }
}

</mosaic_0001>

<llo_original>
// kernel: tpu_custom_call.1
$region0: #{tpu_custom_call.1}
  #allocation0 [shape = 'u32[]', space=smem, size = 0x4, offset = 0x4, fixed_abs, tag = 'smem constant byte address 0x4 - core index']
  #allocation1 [shape = 'u32[72,128]{1,0:T(1,128)}', space=vmem, size = 0x9000, scoped, tag = 'internal scratch']
  %s0 = inlined_call_operand.hbm [shape: f32[32,32], index: 0, kind: input, shape index: {}]
  %s1 = inlined_call_operand.hbm [shape: f32[32,32], index: 1, kind: input, shape index: {}]
  %s2 = inlined_call_operand.hbm [shape: f32[8,32], index: 2, kind: output, shape index: {0}]
  %s3 = inlined_call_operand.hbm [shape: f32[8,32], index: 3, kind: output, shape index: {1}]
  %4 = xla_tuple %s2, %s3
  %s5 = sld [smem:[#allocation0]]
  $region38: #{tpu_custom_call.1} parent=0
    _
  %s7 = ssub.s32 1, %s5
  %s8 = scalar_select 0, %s7, %s5
  $region1: #{tpu_custom_call.1} parent=0
    #allocation2 [shape = 'u8[16384]{0}', space=vmem, size = 0x4000, scoped, tag = 'input window, operand 0, single buffered']
    #allocation3 [shape = 's32[1]{0}', space=sflag, size = 0x4, scoped, tag = 'scoped memory for tpu_custom_call.1']
    #allocation4 [shape = 's32[1]{0}', space=sflag, size = 0x4, scoped, tag = 'scoped memory for tpu_custom_call.1']
    #allocation5 [shape = 'u8[16384]{0}', space=vmem, size = 0x4000, scoped, tag = 'input window, operand 1, single buffered']
    #allocation6 [shape = 's32[1]{0}', space=sflag, size = 0x4, scoped, tag = 'scoped memory for tpu_custom_call.1']
    #allocation7 [shape = 'u8[4096]{0}', space=vmem, size = 0x1000, scoped, tag = 'output window, operand 0, single buffered']
    #allocation8 [shape = 'u8[4096]{0}', space=vmem, size = 0x1000, scoped, tag = 'output window, operand 1, single buffered']
    #allocation9 [shape = 's32[1]{0}', space=sflag, size = 0x4, scoped, tag = 'scoped memory for tpu_custom_call.1']
    %9 = vsyncpa [#allocation3], 0
    %10 = vsyncpa [#allocation6], 0
    %11 = vsyncpa [#allocation4], 0
    %12 = vsyncpa [#allocation9], 0
    // Predicated region
    $region2: #{tpu_custom_call.1} parent=1 // pred_check
      _
    $region3: #{tpu_custom_call.1} parent=1 // pred_check_branch
      %14 = sbr.rel (0) target = $region5
    $region4: #{tpu_custom_call.1} parent=1 // pred_region
      %s15 = sadd.s32 0, 0
      %s16 = smul.u32 4, %s15
      %18 = vsyncadd [#allocation3], 0
      %s19 = smul.addr %s16, 8
      %s20 = scalar_lea.hbm %s0, %s19
      %s21 = sshll.u32 %s20, 4
      %s22 = int_to_ptr.hbm [resolvable:$true] %s21
      %s23 = sshll.u32 [#allocation2], 4
      %s24 = int_to_ptr.vmem [resolvable:$true] %s23
      %29 = dma.hbm_to_vmem [thread:$0]  %s22, 512, %s24, [#allocation3], 128, 128, 8
    $region5: #{tpu_custom_call.1} parent=1 // pred_fallthru
      _
    // Predicated region
    $region6: #{tpu_custom_call.1} parent=1 // pred_check
      _
    $region7: #{tpu_custom_call.1} parent=1 // pred_check_branch
      %31 = sbr.rel (0) target = $region9
    $region8: #{tpu_custom_call.1} parent=1 // pred_region
      %s32 = sadd.s32 0, 0
      %s33 = smul.u32 4, %s32
      %35 = vsyncadd [#allocation6], 0
      %s36 = smul.addr %s33, 8
      %s37 = scalar_lea.hbm %s1, %s36
      %s38 = sshll.u32 %s37, 4
      %s39 = int_to_ptr.hbm [resolvable:$true] %s38
      %s40 = sshll.u32 [#allocation5], 4
      %s41 = int_to_ptr.vmem [resolvable:$true] %s40
      %46 = dma.hbm_to_vmem [thread:$0]  %s39, 512, %s41, [#allocation6], 128, 128, 8
    $region9: #{tpu_custom_call.1} parent=1 // pred_fallthru
      _
    // Predicated region
    $region10: #{tpu_custom_call.1} parent=1 // pred_check
      _
    $region11: #{tpu_custom_call.1} parent=1 // pred_check_branch
      %48 = sbr.rel (0) target = $region13
    $region12: #{tpu_custom_call.1} parent=1 // pred_region
      %50 = dma.done [#allocation3], 512
    $region13: #{tpu_custom_call.1} parent=1 // pred_fallthru
      _
    // Predicated region
    $region14: #{tpu_custom_call.1} parent=1 // pred_check
      _
    $region15: #{tpu_custom_call.1} parent=1 // pred_check_branch
      %52 = sbr.rel (0) target = $region17
    $region16: #{tpu_custom_call.1} parent=1 // pred_region
      %54 = dma.done [#allocation6], 512
    $region17: #{tpu_custom_call.1} parent=1 // pred_fallthru
      _
    %s55 = sadd.s32 0, 0
    %s56 = smul.u32 4, %s55
    %s57 = sadd.s32 0, 0
    %s58 = smul.u32 4, %s57
    %p59 = scmp.eq.s32.totalorder 0, 0
    // Predicated region
    $region18: #{tpu_custom_call.1} parent=1 // pred_check
      %p60 = pneg %p59
    $region19: #{tpu_custom_call.1} parent=1 // pred_check_branch
      %62 = sbr.rel (%p60) target = $region21
    $region20: #{tpu_custom_call.1} parent=1 // pred_region
      %vm63 = vcmask 261120
      %64 = vst.msk [vmem:[#allocation7] sm:$0xff] %vm63, 0.0
      %65 = vst.msk [vmem:[#allocation8] sm:$0xff] %vm63, 0.0
    $region21: #{tpu_custom_call.1} parent=1 // pred_fallthru
      _
    %v66 = vld [vmem:[#allocation2] sm:$0xff]
    %v67 = vld [vmem:[#allocation2 + $0x8] sm:$0xff]
    %v68 = vld [vmem:[#allocation2 + $0x10] sm:$0xff]
    %v69 = vld [vmem:[#allocation2 + $0x18] sm:$0xff]
    %v70 = vld [vmem:[#allocation5] sm:$0xff]
    %v71 = vld [vmem:[#allocation5 + $0x8] sm:$0xff]
    %v72 = vld [vmem:[#allocation5 + $0x10] sm:$0xff]
    %v73 = vld [vmem:[#allocation5 + $0x18] sm:$0xff]
    %v74 = vsub.f32 %v70, %v66
    %v75 = vsub.f32 %v71, %v67
    %v76 = vsub.f32 %v72, %v68
    %v77 = vsub.f32 %v73, %v69
    %v78 = vmul.f32 %v74, %v74
    %v79 = vmul.f32 %v75, %v75
    %v80 = vmul.f32 %v76, %v76
    %v81 = vmul.f32 %v77, %v77
    %v82 = vmul.f32 %v70, %v70
    %v83 = vmul.f32 %v71, %v71
    %v84 = vmul.f32 %v72, %v72
    %v85 = vmul.f32 %v73, %v73
    %v86 = vld [vmem:[#allocation7] sm:$0xff]
    %vm87 = vcmask 261120
    %v88 = vsel %vm87, %v78, 0.0
    %v89 = vsel %vm87, %v79, 0.0
    %v90 = vadd.f32 %v88, %v89
    %v91 = vsel %vm87, %v80, 0.0
    %v92 = vadd.f32 %v90, %v91
    %v93 = vsel %vm87, %v81, 0.0
    %v94 = vadd.f32 %v92, %v93
    %v95 = vadd.f32 %v86, %v94
    %96 = vst.msk [vmem:[#allocation7] sm:$0xff] %vm87, %v95
    %v97 = vld [vmem:[#allocation8] sm:$0xff]
    %v98 = vsel %vm87, %v82, 0.0
    %v99 = vsel %vm87, %v83, 0.0
    %v100 = vadd.f32 %v98, %v99
    %v101 = vsel %vm87, %v84, 0.0
    %v102 = vadd.f32 %v100, %v101
    %v103 = vsel %vm87, %v85, 0.0
    %v104 = vadd.f32 %v102, %v103
    %v105 = vadd.f32 %v97, %v104
    %106 = vst.msk [vmem:[#allocation8] sm:$0xff] %vm87, %v105
    // Predicated region
    $region22: #{tpu_custom_call.1} parent=1 // pred_check
      _
    $region23: #{tpu_custom_call.1} parent=1 // pred_check_branch
      %108 = sbr.rel (0) target = $region25
    $region24: #{tpu_custom_call.1} parent=1 // pred_region
      %110 = vsyncadd [#allocation4], 0
      %s112 = sshll.u32 [#allocation7], 4
      %s113 = int_to_ptr.vmem [resolvable:$true] %s112
      %s114 = sshll.u32 %s2, 4
      %s115 = int_to_ptr.hbm [resolvable:$true] %s114
      %117 = dma.vmem_to_hbm [thread:$0]  %s113, 128, %s115, [#allocation4]
    $region25: #{tpu_custom_call.1} parent=1 // pred_fallthru
      _
    // Predicated region
    $region26: #{tpu_custom_call.1} parent=1 // pred_check
      _
    $region27: #{tpu_custom_call.1} parent=1 // pred_check_branch
      %119 = sbr.rel (0) target = $region29
    $region28: #{tpu_custom_call.1} parent=1 // pred_region
      %121 = vsyncadd [#allocation9], 0
      %s123 = sshll.u32 [#allocation8], 4
      %s124 = int_to_ptr.vmem [resolvable:$true] %s123
      %s125 = sshll.u32 %s3, 4
      %s126 = int_to_ptr.hbm [resolvable:$true] %s125
      %128 = dma.vmem_to_hbm [thread:$0]  %s124, 128, %s126, [#allocation9]
    $region29: #{tpu_custom_call.1} parent=1 // pred_fallthru
      _
    // Predicated region
    $region30: #{tpu_custom_call.1} parent=1 // pred_check
      _
    $region31: #{tpu_custom_call.1} parent=1 // pred_check_branch
      %130 = sbr.rel (0) target = $region33
    $region32: #{tpu_custom_call.1} parent=1 // pred_region
      %132 = dma.done [#allocation4], 128
    $region33: #{tpu_custom_call.1} parent=1 // pred_fallthru
      _
    // Predicated region
    $region34: #{tpu_custom_call.1} parent=1 // pred_check
      _
    $region35: #{tpu_custom_call.1} parent=1 // pred_check_branch
      %134 = sbr.rel (0) target = $region37
    $region36: #{tpu_custom_call.1} parent=1 // pred_region
      %136 = dma.done [#allocation9], 128
    $region37: #{tpu_custom_call.1} parent=1 // pred_fallthru
      _
    %137 = vsyncpa [#allocation3], 1
    %138 = vsyncpa [#allocation6], 1
    %139 = vsyncpa [#allocation4], 1
    %140 = vsyncpa [#allocation9], 1

</llo_original>
